<compile_context>
chip_gen: v7x
topology: tpu7x:2x2x1
jax: 0.10.0
libtpu: 0.0.40
codegen_flags: <defaults>
</compile_context>

<pallas_src>
import functools

import jax
import jax.numpy as jnp
from jax.experimental import pallas as pl
from jax.experimental.pallas import tpu as pltpu

PAD = 128  # lane-aligned hidden width


def _round_up(n, m):
    return ((n + m - 1) // m) * m


def mlp_kernel(x_ref, w1_ref, b1_ref, w2_ref, b2_ref, w3_ref, b3_ref,
               w4_ref, b4_ref, out_ref):
    """Whole forward pass for one batch tile, fused in VMEM.

    x_ref:  (TB, 8)    f32      w1: (8,128) bf16    b1: (1,128) f32
    w2/w3:  (128,128)  bf16     b2/b3: (1,128) f32
    w4:     (1,128)    bf16 (row of the 50->1 layer, zero-padded)
    b4:     (1,1)      f32
    out_ref:(1, TB)    f32  (lane-dense row of per-example predictions)
    """
    x = x_ref[...].astype(jnp.bfloat16)                                  # (TB, 8)

    h1 = jnp.maximum(
        jnp.dot(x, w1_ref[...], preferred_element_type=jnp.float32)
        + b1_ref[...], 0.0)                                              # (TB, 128)
    h2 = jnp.maximum(
        jnp.dot(h1.astype(jnp.bfloat16), w2_ref[...],
                preferred_element_type=jnp.float32) + b2_ref[...], 0.0)  # (TB, 128)
    h3 = jnp.maximum(
        jnp.dot(h2.astype(jnp.bfloat16), w3_ref[...],
                preferred_element_type=jnp.float32) + b3_ref[...], 0.0)  # (TB, 128)

    # Final layer (N=1): contract against the weight *row* so the MXU result is the
    # lane-dense (1, TB) vector of predictions -> unmasked vst, no (TB,1) column store.
    out = jnp.einsum("ok,bk->ob", w4_ref[...], h3.astype(jnp.bfloat16),
                     preferred_element_type=jnp.float32) + b4_ref[...]   # (1, TB)
    out_ref[...] = out.astype(out_ref.dtype)


@functools.partial(jax.jit, static_argnames=("tile_b",))
def mlp_forward(x, params, *, tile_b=512):
    """x: (B, 8) float32. params: output of prepare_params(). Returns (B,) float32."""
    w1, b1, w2, b2, w3, b3, w4, b4 = params
    B, f_in = x.shape

    # Pick a lane-aligned tile: whole (padded) batch for small B, else tile_b rows.
    tb = min(tile_b, _round_up(B, 128))
    b_pad = _round_up(B, tb)
    if b_pad != B:
        x = jnp.pad(x, ((0, b_pad - B), (0, 0)))
    num_tiles = b_pad // tb

    def resident(arr):
        # Constant index_map: parameters are DMA'd once (step 0) and then stay
        # VMEM-resident for the rest of the grid.
        return pl.BlockSpec(arr.shape, lambda i: (0,) * arr.ndim)

    out = pl.pallas_call(
        mlp_kernel,
        out_shape=jax.ShapeDtypeStruct((num_tiles, tb), jnp.float32),
        grid_spec=pltpu.PrefetchScalarGridSpec(
            num_scalar_prefetch=0,
            grid=(num_tiles,),
            in_specs=[
                pl.BlockSpec((tb, f_in), lambda i: (i, 0)),  # x tile
                resident(w1), resident(b1),
                resident(w2), resident(b2),
                resident(w3), resident(b3),
                resident(w4), resident(b4),
            ],
            out_specs=pl.BlockSpec((1, tb), lambda i: (i, 0)),  # lane-dense row per step
        ),
        compiler_params=pltpu.CompilerParams(
            dimension_semantics=("parallel",)),
    )(x, w1, b1, w2, b2, w3, b3, w4, b4)

    return out.reshape(b_pad)[:B]


def init_torch_like_params(key):
    """nn.Linear default init, PyTorch layout: W (out, in), b (out,);
    U(-1/sqrt(fan_in), +1/sqrt(fan_in))."""
    sizes = [(8, 100), (100, 100), (100, 50), (50, 1)]
    params = []
    for fan_in, fan_out in sizes:
        key, kw, kb = jax.random.split(key, 3)
        bound = float(fan_in) ** -0.5
        w = jax.random.uniform(kw, (fan_out, fan_in), jnp.float32, -bound, bound)
        b = jax.random.uniform(kb, (fan_out,), jnp.float32, -bound, bound)
        params.append((w, b))
    return params


def prepare_params(torch_params):
    """Transpose to (in, out), zero-pad hidden dims to 128 lanes, cast weights to bf16.

    Zero padding is exact: padded bias lanes are 0, ReLU keeps them 0, and the
    corresponding zero rows of the next weight matrix contribute nothing."""
    (w1, b1), (w2, b2), (w3, b3), (w4, b4) = torch_params

    def pad_to(a, shape):
        out = jnp.zeros(shape, a.dtype)
        return out.at[tuple(slice(0, s) for s in a.shape)].set(a)

    w1p = pad_to(w1.T, (8, PAD)).astype(jnp.bfloat16)        # (8, 128)
    b1p = pad_to(b1[None, :], (1, PAD))                      # (1, 128) f32
    w2p = pad_to(w2.T, (PAD, PAD)).astype(jnp.bfloat16)      # (128, 128)
    b2p = pad_to(b2[None, :], (1, PAD))
    w3p = pad_to(w3.T, (PAD, PAD)).astype(jnp.bfloat16)      # (128, 128)
    b3p = pad_to(b3[None, :], (1, PAD))
    w4p = pad_to(w4, (1, PAD)).astype(jnp.bfloat16)          # weight row (1, 128)
    b4p = b4.reshape(1, 1).astype(jnp.float32)               # (1, 1)
    return (w1p, b1p, w2p, b2p, w3p, b3p, w4p, b4p)


def mlp_reference(x, torch_params):
    """Pure-JAX f32 reference matching the PyTorch module."""
    h = x
    for i, (w, b) in enumerate(torch_params):
        h = h @ w.T + b
        if i < len(torch_params) - 1:
            h = jnp.maximum(h, 0.0)
    return h[:, 0]


if __name__ == "__main__":
    key = jax.random.PRNGKey(0)
    key, kx = jax.random.split(key)
    B = 16  # tiny test batch -> padded to one 128-row tile, grid=(1,)
    x = jax.random.normal(kx, (B, 8), jnp.float32)

    torch_params = init_torch_like_params(key)
    params = prepare_params(torch_params)

    y = mlp_forward(x, params)
    jax.block_until_ready(y)

    y_ref = mlp_reference(x, torch_params)
    assert y.shape == (B,)
    # bf16 MXU operands vs. the f32 reference -> loosened tolerance.
    assert jnp.allclose(y, y_ref, atol=3e-2, rtol=3e-2), "mismatch vs reference"

    print("KERNEL_OK")
</pallas_src>

<mosaic_0001>
module attributes {stable_mosaic.version = 11 : i64} {
  func.func @mlp_kernel(%arg0: i32, %arg1: memref<128x8xf32, #tpu.memory_space<vmem>>, %arg2: memref<8x128xbf16, #tpu.memory_space<vmem>>, %arg3: memref<1x128xf32, #tpu.memory_space<vmem>>, %arg4: memref<128x128xbf16, #tpu.memory_space<vmem>>, %arg5: memref<1x128xf32, #tpu.memory_space<vmem>>, %arg6: memref<128x128xbf16, #tpu.memory_space<vmem>>, %arg7: memref<1x128xf32, #tpu.memory_space<vmem>>, %arg8: memref<1x128xbf16, #tpu.memory_space<vmem>>, %arg9: memref<1x1xf32, #tpu.memory_space<vmem>>, %arg10: memref<1x128xf32, #tpu.memory_space<vmem>>) attributes {dimension_semantics = [#tpu.dimension_semantics<parallel>], iteration_bounds = array<i64: 1>, scalar_prefetch = 0 : i64, scratch_operands = 0 : i64, tpu.core_type = #tpu.core_type<tc>, window_params = [{transform_indices = @transform_0, window_bounds = array<i64: 128, 8>}, {pipeline_mode = #tpu.pipeline_mode<synchronous>, transform_indices = @transform_1, window_bounds = array<i64: 8, 128>}, {pipeline_mode = #tpu.pipeline_mode<synchronous>, transform_indices = @transform_2, window_bounds = array<i64: 1, 128>}, {pipeline_mode = #tpu.pipeline_mode<synchronous>, transform_indices = @transform_3, window_bounds = array<i64: 128, 128>}, {pipeline_mode = #tpu.pipeline_mode<synchronous>, transform_indices = @transform_4, window_bounds = array<i64: 1, 128>}, {pipeline_mode = #tpu.pipeline_mode<synchronous>, transform_indices = @transform_5, window_bounds = array<i64: 128, 128>}, {pipeline_mode = #tpu.pipeline_mode<synchronous>, transform_indices = @transform_6, window_bounds = array<i64: 1, 128>}, {pipeline_mode = #tpu.pipeline_mode<synchronous>, transform_indices = @transform_7, window_bounds = array<i64: 1, 128>}, {pipeline_mode = #tpu.pipeline_mode<synchronous>, transform_indices = @transform_8, window_bounds = array<i64: 1, 1>}, {transform_indices = @transform_9, window_bounds = array<i64: 1, 128>}]} {
    %c0 = arith.constant 0 : index
    %c0_0 = arith.constant 0 : index
    %0 = vector.load %arg1[%c0, %c0_0] : memref<128x8xf32, #tpu.memory_space<vmem>>, vector<128x8xf32>
    %1 = arith.truncf %0 : vector<128x8xf32> to vector<128x8xbf16>
    %c0_1 = arith.constant 0 : index
    %c0_2 = arith.constant 0 : index
    %2 = vector.load %arg2[%c0_1, %c0_2] : memref<8x128xbf16, #tpu.memory_space<vmem>>, vector<8x128xbf16>
    %cst = arith.constant dense<0.000000e+00> : vector<128x128xf32>
    %3 = tpu.matmul %1, %2, %cst {dimension_numbers = #tpu.dot_dimension_numbers<[1], [0], [0], [1], [0, 0, 1, 1], [], []>} : vector<128x8xbf16>, vector<8x128xbf16>, vector<128x128xf32> -> vector<128x128xf32>
    %c0_3 = arith.constant 0 : index
    %c0_4 = arith.constant 0 : index
    %4 = vector.load %arg3[%c0_3, %c0_4] : memref<1x128xf32, #tpu.memory_space<vmem>>, vector<1x128xf32>
    %5 = vector.broadcast %4 : vector<1x128xf32> to vector<128x128xf32>
    %6 = arith.addf %3, %5 : vector<128x128xf32>
    %cst_5 = arith.constant 0.000000e+00 : f32
    %7 = vector.broadcast %cst_5 : f32 to vector<128x128xf32>
    %8 = arith.maximumf %6, %7 : vector<128x128xf32>
    %9 = arith.truncf %8 : vector<128x128xf32> to vector<128x128xbf16>
    %c0_6 = arith.constant 0 : index
    %c0_7 = arith.constant 0 : index
    %10 = vector.load %arg4[%c0_6, %c0_7] : memref<128x128xbf16, #tpu.memory_space<vmem>>, vector<128x128xbf16>
    %cst_8 = arith.constant dense<0.000000e+00> : vector<128x128xf32>
    %11 = tpu.matmul %9, %10, %cst_8 {dimension_numbers = #tpu.dot_dimension_numbers<[1], [0], [0], [1], [0, 0, 1, 1], [], []>} : vector<128x128xbf16>, vector<128x128xbf16>, vector<128x128xf32> -> vector<128x128xf32>
    %c0_9 = arith.constant 0 : index
    %c0_10 = arith.constant 0 : index
    %12 = vector.load %arg5[%c0_9, %c0_10] : memref<1x128xf32, #tpu.memory_space<vmem>>, vector<1x128xf32>
    %13 = vector.broadcast %12 : vector<1x128xf32> to vector<128x128xf32>
    %14 = arith.addf %11, %13 : vector<128x128xf32>
    %cst_11 = arith.constant 0.000000e+00 : f32
    %15 = vector.broadcast %cst_11 : f32 to vector<128x128xf32>
    %16 = arith.maximumf %14, %15 : vector<128x128xf32>
    %17 = arith.truncf %16 : vector<128x128xf32> to vector<128x128xbf16>
    %c0_12 = arith.constant 0 : index
    %c0_13 = arith.constant 0 : index
    %18 = vector.load %arg6[%c0_12, %c0_13] : memref<128x128xbf16, #tpu.memory_space<vmem>>, vector<128x128xbf16>
    %cst_14 = arith.constant dense<0.000000e+00> : vector<128x128xf32>
    %19 = tpu.matmul %17, %18, %cst_14 {dimension_numbers = #tpu.dot_dimension_numbers<[1], [0], [0], [1], [0, 0, 1, 1], [], []>} : vector<128x128xbf16>, vector<128x128xbf16>, vector<128x128xf32> -> vector<128x128xf32>
    %c0_15 = arith.constant 0 : index
    %c0_16 = arith.constant 0 : index
    %20 = vector.load %arg7[%c0_15, %c0_16] : memref<1x128xf32, #tpu.memory_space<vmem>>, vector<1x128xf32>
    %21 = vector.broadcast %20 : vector<1x128xf32> to vector<128x128xf32>
    %22 = arith.addf %19, %21 : vector<128x128xf32>
    %cst_17 = arith.constant 0.000000e+00 : f32
    %23 = vector.broadcast %cst_17 : f32 to vector<128x128xf32>
    %24 = arith.maximumf %22, %23 : vector<128x128xf32>
    %c0_18 = arith.constant 0 : index
    %c0_19 = arith.constant 0 : index
    %25 = vector.load %arg8[%c0_18, %c0_19] : memref<1x128xbf16, #tpu.memory_space<vmem>>, vector<1x128xbf16>
    %26 = arith.truncf %24 : vector<128x128xf32> to vector<128x128xbf16>
    "tpu.trace_start"() <{level = 10 : i32, message = "ok,bk->ob"}> : () -> ()
    %cst_20 = arith.constant dense<0.000000e+00> : vector<1x128xf32>
    %27 = tpu.matmul %25, %26, %cst_20 {dimension_numbers = #tpu.dot_dimension_numbers<[1], [1], [0], [0], [0, 0, 1, 0], [], []>} : vector<1x128xbf16>, vector<128x128xbf16>, vector<1x128xf32> -> vector<1x128xf32>
    "tpu.trace_stop"() : () -> ()
    %c0_21 = arith.constant 0 : index
    %c0_22 = arith.constant 0 : index
    %28 = vector.load %arg9[%c0_21, %c0_22] : memref<1x1xf32, #tpu.memory_space<vmem>>, vector<1x1xf32>
    %29 = vector.broadcast %28 : vector<1x1xf32> to vector<1x128xf32>
    %30 = arith.addf %27, %29 : vector<1x128xf32>
    %c0_23 = arith.constant 0 : index
    %c0_24 = arith.constant 0 : index
    %31 = vector.load %arg10[%c0_23, %c0_24] : memref<1x128xf32, #tpu.memory_space<vmem>>, vector<1x128xf32>
    tpu.vector_store %arg10[%c0_23, %c0_24], %30 {strides = array<i32>} : memref<1x128xf32, #tpu.memory_space<vmem>>, vector<1x128xf32>,
    return
  }
  func.func @transform_0(%arg0: i32) -> (i32, i32) {
    %c0_i32 = arith.constant 0 : i32
    %c0_i32_0 = arith.constant 0 : i32
    return %arg0, %c0_i32 : i32, i32
  }
  func.func @transform_1(%arg0: i32) -> (i32, i32) {
    %c0_i32 = arith.constant 0 : i32
    %c0_i32_0 = arith.constant 0 : i32
    %c0_i32_1 = arith.constant 0 : i32
    return %c0_i32, %c0_i32_0 : i32, i32
  }
  func.func @transform_2(%arg0: i32) -> (i32, i32) {
    %c0_i32 = arith.constant 0 : i32
    %c0_i32_0 = arith.constant 0 : i32
    %c0_i32_1 = arith.constant 0 : i32
    return %c0_i32, %c0_i32_0 : i32, i32
  }
  func.func @transform_3(%arg0: i32) -> (i32, i32) {
    %c0_i32 = arith.constant 0 : i32
    %c0_i32_0 = arith.constant 0 : i32
    %c0_i32_1 = arith.constant 0 : i32
    return %c0_i32, %c0_i32_0 : i32, i32
  }
  func.func @transform_4(%arg0: i32) -> (i32, i32) {
    %c0_i32 = arith.constant 0 : i32
    %c0_i32_0 = arith.constant 0 : i32
    %c0_i32_1 = arith.constant 0 : i32
    return %c0_i32, %c0_i32_0 : i32, i32
  }
  func.func @transform_5(%arg0: i32) -> (i32, i32) {
    %c0_i32 = arith.constant 0 : i32
    %c0_i32_0 = arith.constant 0 : i32
    %c0_i32_1 = arith.constant 0 : i32
    return %c0_i32, %c0_i32_0 : i32, i32
  }
  func.func @transform_6(%arg0: i32) -> (i32, i32) {
    %c0_i32 = arith.constant 0 : i32
    %c0_i32_0 = arith.constant 0 : i32
    %c0_i32_1 = arith.constant 0 : i32
    return %c0_i32, %c0_i32_0 : i32, i32
  }
  func.func @transform_7(%arg0: i32) -> (i32, i32) {
    %c0_i32 = arith.constant 0 : i32
    %c0_i32_0 = arith.constant 0 : i32
    %c0_i32_1 = arith.constant 0 : i32
    return %c0_i32, %c0_i32_0 : i32, i32
  }
  func.func @transform_8(%arg0: i32) -> (i32, i32) {
    %c0_i32 = arith.constant 0 : i32
    %c0_i32_0 = arith.constant 0 : i32
    %c0_i32_1 = arith.constant 0 : i32
    return %c0_i32, %c0_i32_0 : i32, i32
  }
  func.func @transform_9(%arg0: i32) -> (i32, i32) {
    %c0_i32 = arith.constant 0 : i32
    %c0_i32_0 = arith.constant 0 : i32
    return %arg0, %c0_i32 : i32, i32
  }
}

</mosaic_0001>

<llo_original>
// kernel: mlp_forward.1
$region0: #{mlp_forward.1}
  #allocation0 [shape = 'u32[]', space=smem, size = 0x4, offset = 0x4, fixed_abs, tag = 'smem constant byte address 0x4 - core index']
  #allocation1 [shape = 'u32[144,128]{1,0:T(1,128)}', space=vmem, size = 0x12000, scoped, tag = 'internal scratch']
  #allocation2 [shape = 'f32[1,1]{1,0:T(1,128)S(1)}', space=vmem, size = 0x200, scoped, tag = 'scoped memory for mlp_forward.1']
  %s0 = inlined_call_operand.vmem [shape: f32[128,8], index: 0, kind: input, shape index: {}]
  %s1 = inlined_call_operand.vmem [shape: bf16[8,128], index: 1, kind: input, shape index: {}]
  %s2 = inlined_call_operand.vmem [shape: f32[1,128], index: 2, kind: input, shape index: {}]
  %s3 = inlined_call_operand.vmem [shape: bf16[128,128], index: 3, kind: input, shape index: {}]
  %s4 = inlined_call_operand.vmem [shape: f32[1,128], index: 4, kind: input, shape index: {}]
  %s5 = inlined_call_operand.vmem [shape: bf16[128,128], index: 5, kind: input, shape index: {}]
  %s6 = inlined_call_operand.vmem [shape: f32[1,128], index: 6, kind: input, shape index: {}]
  %s7 = inlined_call_operand.vmem [shape: bf16[1,128], index: 7, kind: input, shape index: {}]
  %s8 = inlined_call_operand.<no memory space> [shape: f32[1,1], index: 8, kind: input, shape index: {}]
  %s9 = inlined_call_operand.vmem [shape: f32[1,128], index: 9, kind: output, shape index: {}]
  %s10 = sld [smem:[#allocation0]]
  $region46: #{mlp_forward.1} parent=0
    _
  %s12 = ssub.s32 1, %s10
  %s13 = scalar_select 0, %s12, %s10
  %v14 = vstv %s8
  %15 = vst [vmem:[#allocation2] sm:$0x1] %v14
  // Predicated region
  $region2: #{mlp_forward.1} parent=0 // pred_check
    _
  $region3: #{mlp_forward.1} parent=0 // pred_check_branch
    %17 = sbr.rel (0) target = $region5
  $region4: #{mlp_forward.1} parent=0 // pred_region
    _
  $region5: #{mlp_forward.1} parent=0 // pred_fallthru
    _
  // Predicated region
  $region6: #{mlp_forward.1} parent=0 // pred_check
    _
  $region7: #{mlp_forward.1} parent=0 // pred_check_branch
    %19 = sbr.rel (0) target = $region9
  $region8: #{mlp_forward.1} parent=0 // pred_region
    _
  $region9: #{mlp_forward.1} parent=0 // pred_fallthru
    _
  // Predicated region
  $region10: #{mlp_forward.1} parent=0 // pred_check
    _
  $region11: #{mlp_forward.1} parent=0 // pred_check_branch
    %21 = sbr.rel (0) target = $region13
  $region12: #{mlp_forward.1} parent=0 // pred_region
    _
  $region13: #{mlp_forward.1} parent=0 // pred_fallthru
    _
  // Predicated region
  $region14: #{mlp_forward.1} parent=0 // pred_check
    _
  $region15: #{mlp_forward.1} parent=0 // pred_check_branch
    %23 = sbr.rel (0) target = $region17
  $region16: #{mlp_forward.1} parent=0 // pred_region
    _
  $region17: #{mlp_forward.1} parent=0 // pred_fallthru
    _
  // Predicated region
  $region18: #{mlp_forward.1} parent=0 // pred_check
    _
  $region19: #{mlp_forward.1} parent=0 // pred_check_branch
    %25 = sbr.rel (0) target = $region21
  $region20: #{mlp_forward.1} parent=0 // pred_region
    _
  $region21: #{mlp_forward.1} parent=0 // pred_fallthru
    _
  // Predicated region
  $region22: #{mlp_forward.1} parent=0 // pred_check
    _
  $region23: #{mlp_forward.1} parent=0 // pred_check_branch
    %27 = sbr.rel (0) target = $region25
  $region24: #{mlp_forward.1} parent=0 // pred_region
    _
  $region25: #{mlp_forward.1} parent=0 // pred_fallthru
    _
  // Predicated region
  $region26: #{mlp_forward.1} parent=0 // pred_check
    _
  $region27: #{mlp_forward.1} parent=0 // pred_check_branch
    %29 = sbr.rel (0) target = $region29
  $region28: #{mlp_forward.1} parent=0 // pred_region
    _
  $region29: #{mlp_forward.1} parent=0 // pred_fallthru
    _
  // Predicated region
  $region30: #{mlp_forward.1} parent=0 // pred_check
    _
  $region31: #{mlp_forward.1} parent=0 // pred_check_branch
    %31 = sbr.rel (0) target = $region33
  $region32: #{mlp_forward.1} parent=0 // pred_region
    _
  $region33: #{mlp_forward.1} parent=0 // pred_fallthru
    _
  // Predicated region
  $region34: #{mlp_forward.1} parent=0 // pred_check
    _
  $region35: #{mlp_forward.1} parent=0 // pred_check_branch
    %33 = sbr.rel (0) target = $region37
  $region36: #{mlp_forward.1} parent=0 // pred_region
    _
  $region37: #{mlp_forward.1} parent=0 // pred_fallthru
    _
  %v35 = vld [vmem:[%s0] sm:$0xff]
  %v36 = vld [vmem:[%s0 + $0x8] sm:$0xff]
  %v37 = vld [vmem:[%s0 + $0x10] sm:$0xff]
  %v38 = vld [vmem:[%s0 + $0x18] sm:$0xff]
  %v39 = vld [vmem:[%s0 + $0x20] sm:$0xff]
  %v40 = vld [vmem:[%s0 + $0x28] sm:$0xff]
  %v41 = vld [vmem:[%s0 + $0x30] sm:$0xff]
  %v42 = vld [vmem:[%s0 + $0x38] sm:$0xff]
  %v43 = vld [vmem:[%s0 + $0x40] sm:$0xff]
  %v44 = vld [vmem:[%s0 + $0x48] sm:$0xff]
  %v45 = vld [vmem:[%s0 + $0x50] sm:$0xff]
  %v46 = vld [vmem:[%s0 + $0x58] sm:$0xff]
  %v47 = vld [vmem:[%s0 + $0x60] sm:$0xff]
  %v48 = vld [vmem:[%s0 + $0x68] sm:$0xff]
  %v49 = vld [vmem:[%s0 + $0x70] sm:$0xff]
  %v50 = vld [vmem:[%s0 + $0x78] sm:$0xff]
  %v51 = vpack.c.bf16 %v36, %v35
  %v52 = vpack.c.bf16 %v38, %v37
  %v53 = vpack.c.bf16 %v40, %v39
  %v54 = vpack.c.bf16 %v42, %v41
  %v55 = vpack.c.bf16 %v44, %v43
  %v56 = vpack.c.bf16 %v46, %v45
  %v57 = vpack.c.bf16 %v48, %v47
  %v58 = vpack.c.bf16 %v50, %v49
  %v59 = vld [vmem:[%s1] sm:$0xf]
  %v60 = vld [vmem:[%s2] sm:$0x1]
  %v62 = vlaneseq
  %v63 = vshrl.u32 %v62, 7
  %v64 = vsub.s32 0, %v63
  %v65 = vrot.slane %v60, %v64
  %vm67 = vcmask 64512
  %v69 = vsel %vm67, %v51, 0
  %v72 = vsel %vm67, %v52, 0
  %v75 = vsel %vm67, %v53, 0
  %v78 = vsel %vm67, %v54, 0
  %v81 = vsel %vm67, %v55, 0
  %v84 = vsel %vm67, %v56, 0
  %v87 = vsel %vm67, %v57, 0
  %v90 = vsel %vm67, %v58, 0
  %vm92 = vcmask 1043456
  %v94 = vsel %vm92, %v59, 0
  %96 = vmatprep.subr.bf16.mxu0 0
  %97 = vmatpush1.bf16.msra.mxu0 %v94
  %98 = vmatprep.subr.bf16.mxu0 0
  %99 = vmatpush1.bf16.msra.mxu0 0
  %100 = vmatprep.subr.bf16.mxu0 0
  %101 = vmatpush1.bf16.msra.mxu0 0
  %102 = vmatprep.subr.bf16.mxu0 0
  %103 = vmatpush1.bf16.msra.mxu0 0
  %104 = vmatprep.subr.bf16.mxu0 0
  %105 = vmatpush1.bf16.msra.mxu0 0
  %106 = vmatprep.subr.bf16.mxu0 0
  %107 = vmatpush1.bf16.msra.mxu0 0
  %108 = vmatprep.subr.bf16.mxu0 0
  %109 = vmatpush1.bf16.msra.mxu0 0
  %110 = vmatprep.subr.bf16.mxu0 0
  %111 = vmatpush1.bf16.msra.mxu0 0
  %112 = vmatprep.subr.bf16.mxu0 0
  %113 = vmatpush1.bf16.msra.mxu0 0
  %114 = vmatprep.subr.bf16.mxu0 0
  %115 = vmatpush1.bf16.msra.mxu0 0
  %116 = vmatprep.subr.bf16.mxu0 0
  %117 = vmatpush1.bf16.msra.mxu0 0
  %118 = vmatprep.subr.bf16.mxu0 0
  %119 = vmatpush1.bf16.msra.mxu0 0
  %120 = vmatprep.subr.bf16.mxu0 0
  %121 = vmatpush1.bf16.msra.mxu0 0
  %122 = vmatprep.subr.bf16.mxu0 0
  %123 = vmatpush1.bf16.msra.mxu0 0
  %124 = vmatprep.subr.bf16.mxu0 0
  %125 = vmatpush1.bf16.msra.mxu0 0
  %126 = vmatprep.subr.bf16.mxu0 0
  %127 = vmatpush1.bf16.msra.mxu0 0
  %128 = vmatprep.mubr.bf16.mxu0 0
  %129 = vmatmul.mubr.bf16.gmra.mrb[0].mxu0 %v69
  %v130 = vpop.f32.mrb[0].mxu0
  %v131 = vadd.f32 %v65, %v130
  %v132 = vpop.f32.mrb[0].mxu0
  %v133 = vpop.f32.mrb[0].mxu0
  %v134 = vadd.f32 %v65, %v133
  %v135 = vpop.f32.mrb[0].mxu0
  %136 = vmatprep.mubr.bf16.mxu0 0
  %137 = vmatmul.mubr.bf16.gmra.mrb[0].mxu0 %v72
  %v138 = vpop.f32.mrb[0].mxu0
  %v139 = vadd.f32 %v65, %v138
  %v140 = vpop.f32.mrb[0].mxu0
  %v141 = vpop.f32.mrb[0].mxu0
  %v142 = vadd.f32 %v65, %v141
  %v143 = vpop.f32.mrb[0].mxu0
  %144 = vmatprep.mubr.bf16.mxu0 0
  %145 = vmatmul.mubr.bf16.gmra.mrb[0].mxu0 %v75
  %v146 = vpop.f32.mrb[0].mxu0
  %v147 = vadd.f32 %v65, %v146
  %v148 = vpop.f32.mrb[0].mxu0
  %v149 = vpop.f32.mrb[0].mxu0
  %v150 = vadd.f32 %v65, %v149
  %v151 = vpop.f32.mrb[0].mxu0
  %152 = vmatprep.mubr.bf16.mxu0 0
  %153 = vmatmul.mubr.bf16.gmra.mrb[0].mxu0 %v78
  %v154 = vpop.f32.mrb[0].mxu0
  %v155 = vadd.f32 %v65, %v154
  %v156 = vpop.f32.mrb[0].mxu0
  %v157 = vpop.f32.mrb[0].mxu0
  %v158 = vadd.f32 %v65, %v157
  %v159 = vpop.f32.mrb[0].mxu0
  %160 = vmatprep.mubr.bf16.mxu0 0
  %161 = vmatmul.mubr.bf16.gmra.mrb[0].mxu0 %v81
  %v162 = vpop.f32.mrb[0].mxu0
  %v163 = vadd.f32 %v65, %v162
  %v164 = vpop.f32.mrb[0].mxu0
  %v165 = vpop.f32.mrb[0].mxu0
  %v166 = vadd.f32 %v65, %v165
  %v167 = vpop.f32.mrb[0].mxu0
  %168 = vmatprep.mubr.bf16.mxu0 0
  %169 = vmatmul.mubr.bf16.gmra.mrb[0].mxu0 %v84
  %v170 = vpop.f32.mrb[0].mxu0
  %v171 = vadd.f32 %v65, %v170
  %v172 = vpop.f32.mrb[0].mxu0
  %v173 = vpop.f32.mrb[0].mxu0
  %v174 = vadd.f32 %v65, %v173
  %v175 = vpop.f32.mrb[0].mxu0
  %176 = vmatprep.mubr.bf16.mxu0 0
  %177 = vmatmul.mubr.bf16.gmra.mrb[0].mxu0 %v87
  %v178 = vpop.f32.mrb[0].mxu0
  %v179 = vadd.f32 %v65, %v178
  %v180 = vpop.f32.mrb[0].mxu0
  %v181 = vpop.f32.mrb[0].mxu0
  %v182 = vadd.f32 %v65, %v181
  %v183 = vpop.f32.mrb[0].mxu0
  %184 = vmatprep.mubr.bf16.mxu0 0
  %185 = vmatmul.mubr.bf16.gmra.mrb[0].mxu0 %v90
  %v186 = vpop.f32.mrb[0].mxu0
  %v187 = vadd.f32 %v65, %v186
  %v188 = vpop.f32.mrb[0].mxu0
  %v189 = vpop.f32.mrb[0].mxu0
  %v190 = vadd.f32 %v65, %v189
  %v191 = vpop.f32.mrb[0].mxu0
  %192 = vdwg.mxu0
  %v193 = vmax.f32 %v131, 0.0
  %v194 = vmax.f32 %v134, 0.0
  %v195 = vmax.f32 %v139, 0.0
  %v196 = vmax.f32 %v142, 0.0
  %v197 = vmax.f32 %v147, 0.0
  %v198 = vmax.f32 %v150, 0.0
  %v199 = vmax.f32 %v155, 0.0
  %v200 = vmax.f32 %v158, 0.0
  %v201 = vmax.f32 %v163, 0.0
  %v202 = vmax.f32 %v166, 0.0
  %v203 = vmax.f32 %v171, 0.0
  %v204 = vmax.f32 %v174, 0.0
  %v205 = vmax.f32 %v179, 0.0
  %v206 = vmax.f32 %v182, 0.0
  %v207 = vmax.f32 %v187, 0.0
  %v208 = vmax.f32 %v190, 0.0
  %v209 = vpack.c.bf16 %v194, %v193
  %v210 = vpack.c.bf16 %v196, %v195
  %v211 = vpack.c.bf16 %v198, %v197
  %v212 = vpack.c.bf16 %v200, %v199
  %v213 = vpack.c.bf16 %v202, %v201
  %v214 = vpack.c.bf16 %v204, %v203
  %v215 = vpack.c.bf16 %v206, %v205
  %v216 = vpack.c.bf16 %v208, %v207
  %v217 = vld [vmem:[%s3] sm:$0xf]
  %v218 = vld [vmem:[%s3 + $0x4] sm:$0xf]
  %v219 = vld [vmem:[%s3 + $0x8] sm:$0xf]
  %v220 = vld [vmem:[%s3 + $0xc] sm:$0xf]
  %v221 = vld [vmem:[%s3 + $0x10] sm:$0xf]
  %v222 = vld [vmem:[%s3 + $0x14] sm:$0xf]
  %v223 = vld [vmem:[%s3 + $0x18] sm:$0xf]
  %v224 = vld [vmem:[%s3 + $0x1c] sm:$0xf]
  %v225 = vld [vmem:[%s3 + $0x20] sm:$0xf]
  %v226 = vld [vmem:[%s3 + $0x24] sm:$0xf]
  %v227 = vld [vmem:[%s3 + $0x28] sm:$0xf]
  %v228 = vld [vmem:[%s3 + $0x2c] sm:$0xf]
  %v229 = vld [vmem:[%s3 + $0x30] sm:$0xf]
  %v230 = vld [vmem:[%s3 + $0x34] sm:$0xf]
  %v231 = vld [vmem:[%s3 + $0x38] sm:$0xf]
  %v232 = vld [vmem:[%s3 + $0x3c] sm:$0xf]
  %v233 = vld [vmem:[%s4] sm:$0x1]
  %v235 = vlaneseq
  %v236 = vshrl.u32 %v235, 7
  %v237 = vsub.s32 0, %v236
  %v238 = vrot.slane %v233, %v237
  %v256 = vunpack.c.l.b16 %v217
  %v257 = vunpack.c.l.b16 %v218
  %v258 = vunpack.c.l.b16 %v219
  %v259 = vunpack.c.l.b16 %v220
  %v260 = vunpack.c.l.b16 %v221
  %v261 = vunpack.c.l.b16 %v222
  %v262 = vunpack.c.l.b16 %v223
  %v263 = vunpack.c.l.b16 %v224
  %v264 = vunpack.c.l.b16 %v225
  %v265 = vunpack.c.l.b16 %v226
  %v266 = vunpack.c.l.b16 %v227
  %v267 = vunpack.c.l.b16 %v228
  %v268 = vunpack.c.l.b16 %v229
  %v269 = vunpack.c.l.b16 %v230
  %v270 = vunpack.c.l.b16 %v231
  %v271 = vunpack.c.l.b16 %v232
  %v272 = vpack.c.b16 %v257, %v256
  %v273 = vpack.c.b16 %v259, %v258
  %v274 = vpack.c.b16 %v261, %v260
  %v275 = vpack.c.b16 %v263, %v262
  %v276 = vpack.c.b16 %v265, %v264
  %v277 = vpack.c.b16 %v267, %v266
  %v278 = vpack.c.b16 %v269, %v268
  %v279 = vpack.c.b16 %v271, %v270
  %288 = vmatprep.subr.bf16.mxu0 0
  %289 = vmatpush1.bf16.msra.mxu0 %v272
  %290 = vmatprep.subr.bf16.mxu0 0
  %291 = vmatpush1.bf16.msra.mxu0 %v273
  %292 = vmatprep.subr.bf16.mxu0 0
  %293 = vmatpush1.bf16.msra.mxu0 %v274
  %294 = vmatprep.subr.bf16.mxu0 0
  %295 = vmatpush1.bf16.msra.mxu0 %v275
  %296 = vmatprep.subr.bf16.mxu0 0
  %297 = vmatpush1.bf16.msra.mxu0 %v276
  %298 = vmatprep.subr.bf16.mxu0 0
  %299 = vmatpush1.bf16.msra.mxu0 %v277
  %300 = vmatprep.subr.bf16.mxu0 0
  %301 = vmatpush1.bf16.msra.mxu0 %v278
  %302 = vmatprep.subr.bf16.mxu0 0
  %303 = vmatpush1.bf16.msra.mxu0 %v279
  %304 = vmatprep.subr.bf16.mxu0 0
  %305 = vmatpush1.bf16.msra.mxu0 0
  %306 = vmatprep.subr.bf16.mxu0 0
  %307 = vmatpush1.bf16.msra.mxu0 0
  %308 = vmatprep.subr.bf16.mxu0 0
  %309 = vmatpush1.bf16.msra.mxu0 0
  %310 = vmatprep.subr.bf16.mxu0 0
  %311 = vmatpush1.bf16.msra.mxu0 0
  %312 = vmatprep.subr.bf16.mxu0 0
  %313 = vmatpush1.bf16.msra.mxu0 0
  %314 = vmatprep.subr.bf16.mxu0 0
  %315 = vmatpush1.bf16.msra.mxu0 0
  %316 = vmatprep.subr.bf16.mxu0 0
  %317 = vmatpush1.bf16.msra.mxu0 0
  %318 = vmatprep.subr.bf16.mxu0 0
  %319 = vmatpush1.bf16.msra.mxu0 0
  %320 = vmatprep.mubr.bf16.mxu0 0
  %321 = vmatmul.mubr.bf16.gmra.mrb[0].mxu0 %v209
  %v322 = vpop.f32.mrb[0].mxu0
  %v323 = vadd.f32 %v238, %v322
  %v324 = vpop.f32.mrb[0].mxu0
  %v325 = vpop.f32.mrb[0].mxu0
  %v326 = vadd.f32 %v238, %v325
  %v327 = vpop.f32.mrb[0].mxu0
  %328 = vmatprep.mubr.bf16.mxu0 0
  %329 = vmatmul.mubr.bf16.gmra.mrb[0].mxu0 %v210
  %v330 = vpop.f32.mrb[0].mxu0
  %v331 = vadd.f32 %v238, %v330
  %v332 = vpop.f32.mrb[0].mxu0
  %v333 = vpop.f32.mrb[0].mxu0
  %v334 = vadd.f32 %v238, %v333
  %v335 = vpop.f32.mrb[0].mxu0
  %336 = vmatprep.mubr.bf16.mxu0 0
  %337 = vmatmul.mubr.bf16.gmra.mrb[0].mxu0 %v211
  %v338 = vpop.f32.mrb[0].mxu0
  %v339 = vadd.f32 %v238, %v338
  %v340 = vpop.f32.mrb[0].mxu0
  %v341 = vpop.f32.mrb[0].mxu0
  %v342 = vadd.f32 %v238, %v341
  %v343 = vpop.f32.mrb[0].mxu0
  %344 = vmatprep.mubr.bf16.mxu0 0
  %345 = vmatmul.mubr.bf16.gmra.mrb[0].mxu0 %v212
  %v346 = vpop.f32.mrb[0].mxu0
  %v347 = vadd.f32 %v238, %v346
  %v348 = vpop.f32.mrb[0].mxu0
  %v349 = vpop.f32.mrb[0].mxu0
  %v350 = vadd.f32 %v238, %v349
  %v351 = vpop.f32.mrb[0].mxu0
  %352 = vmatprep.mubr.bf16.mxu0 0
  %353 = vmatmul.mubr.bf16.gmra.mrb[0].mxu0 %v213
  %v354 = vpop.f32.mrb[0].mxu0
  %v355 = vadd.f32 %v238, %v354
  %v356 = vpop.f32.mrb[0].mxu0
  %v357 = vpop.f32.mrb[0].mxu0
  %v358 = vadd.f32 %v238, %v357
  %v359 = vpop.f32.mrb[0].mxu0
  %360 = vmatprep.mubr.bf16.mxu0 0
  %361 = vmatmul.mubr.bf16.gmra.mrb[0].mxu0 %v214
  %v362 = vpop.f32.mrb[0].mxu0
  %v363 = vadd.f32 %v238, %v362
  %v364 = vpop.f32.mrb[0].mxu0
  %v365 = vpop.f32.mrb[0].mxu0
  %v366 = vadd.f32 %v238, %v365
  %v367 = vpop.f32.mrb[0].mxu0
  %368 = vmatprep.mubr.bf16.mxu0 0
  %369 = vmatmul.mubr.bf16.gmra.mrb[0].mxu0 %v215
  %v370 = vpop.f32.mrb[0].mxu0
  %v371 = vadd.f32 %v238, %v370
  %v372 = vpop.f32.mrb[0].mxu0
  %v373 = vpop.f32.mrb[0].mxu0
  %v374 = vadd.f32 %v238, %v373
  %v375 = vpop.f32.mrb[0].mxu0
  %376 = vmatprep.mubr.bf16.mxu0 0
  %377 = vmatmul.mubr.bf16.gmra.mrb[0].mxu0 %v216
  %v378 = vpop.f32.mrb[0].mxu0
  %v379 = vadd.f32 %v238, %v378
  %v380 = vpop.f32.mrb[0].mxu0
  %v381 = vpop.f32.mrb[0].mxu0
  %v382 = vadd.f32 %v238, %v381
  %v383 = vpop.f32.mrb[0].mxu0
  %384 = vdwg.mxu0
  %v385 = vmax.f32 %v323, 0.0
  %v386 = vmax.f32 %v326, 0.0
  %v387 = vmax.f32 %v331, 0.0
  %v388 = vmax.f32 %v334, 0.0
  %v389 = vmax.f32 %v339, 0.0
  %v390 = vmax.f32 %v342, 0.0
  %v391 = vmax.f32 %v347, 0.0
  %v392 = vmax.f32 %v350, 0.0
  %v393 = vmax.f32 %v355, 0.0
  %v394 = vmax.f32 %v358, 0.0
  %v395 = vmax.f32 %v363, 0.0
  %v396 = vmax.f32 %v366, 0.0
  %v397 = vmax.f32 %v371, 0.0
  %v398 = vmax.f32 %v374, 0.0
  %v399 = vmax.f32 %v379, 0.0
  %v400 = vmax.f32 %v382, 0.0
  %v401 = vpack.c.bf16 %v386, %v385
  %v402 = vpack.c.bf16 %v388, %v387
  %v403 = vpack.c.bf16 %v390, %v389
  %v404 = vpack.c.bf16 %v392, %v391
  %v405 = vpack.c.bf16 %v394, %v393
  %v406 = vpack.c.bf16 %v396, %v395
  %v407 = vpack.c.bf16 %v398, %v397
  %v408 = vpack.c.bf16 %v400, %v399
  %v409 = vld [vmem:[%s5] sm:$0xf]
  %v410 = vld [vmem:[%s5 + $0x4] sm:$0xf]
  %v411 = vld [vmem:[%s5 + $0x8] sm:$0xf]
  %v412 = vld [vmem:[%s5 + $0xc] sm:$0xf]
  %v413 = vld [vmem:[%s5 + $0x10] sm:$0xf]
  %v414 = vld [vmem:[%s5 + $0x14] sm:$0xf]
  %v415 = vld [vmem:[%s5 + $0x18] sm:$0xf]
  %v416 = vld [vmem:[%s5 + $0x1c] sm:$0xf]
  %v417 = vld [vmem:[%s5 + $0x20] sm:$0xf]
  %v418 = vld [vmem:[%s5 + $0x24] sm:$0xf]
  %v419 = vld [vmem:[%s5 + $0x28] sm:$0xf]
  %v420 = vld [vmem:[%s5 + $0x2c] sm:$0xf]
  %v421 = vld [vmem:[%s5 + $0x30] sm:$0xf]
  %v422 = vld [vmem:[%s5 + $0x34] sm:$0xf]
  %v423 = vld [vmem:[%s5 + $0x38] sm:$0xf]
  %v424 = vld [vmem:[%s5 + $0x3c] sm:$0xf]
  %v425 = vld [vmem:[%s6] sm:$0x1]
  %v427 = vlaneseq
  %v428 = vshrl.u32 %v427, 7
  %v429 = vsub.s32 0, %v428
  %v430 = vrot.slane %v425, %v429
  %v448 = vunpack.c.l.b16 %v409
  %v449 = vunpack.c.l.b16 %v410
  %v450 = vunpack.c.l.b16 %v411
  %v451 = vunpack.c.l.b16 %v412
  %v452 = vunpack.c.l.b16 %v413
  %v453 = vunpack.c.l.b16 %v414
  %v454 = vunpack.c.l.b16 %v415
  %v455 = vunpack.c.l.b16 %v416
  %v456 = vunpack.c.l.b16 %v417
  %v457 = vunpack.c.l.b16 %v418
  %v458 = vunpack.c.l.b16 %v419
  %v459 = vunpack.c.l.b16 %v420
  %v460 = vunpack.c.l.b16 %v421
  %v461 = vunpack.c.l.b16 %v422
  %v462 = vunpack.c.l.b16 %v423
  %v463 = vunpack.c.l.b16 %v424
  %v464 = vpack.c.b16 %v449, %v448
  %v465 = vpack.c.b16 %v451, %v450
  %v466 = vpack.c.b16 %v453, %v452
  %v467 = vpack.c.b16 %v455, %v454
  %v468 = vpack.c.b16 %v457, %v456
  %v469 = vpack.c.b16 %v459, %v458
  %v470 = vpack.c.b16 %v461, %v460
  %v471 = vpack.c.b16 %v463, %v462
  %480 = vmatprep.subr.bf16.mxu0 0
  %481 = vmatpush1.bf16.msra.mxu0 %v464
  %482 = vmatprep.subr.bf16.mxu0 0
  %483 = vmatpush1.bf16.msra.mxu0 %v465
  %484 = vmatprep.subr.bf16.mxu0 0
  %485 = vmatpush1.bf16.msra.mxu0 %v466
  %486 = vmatprep.subr.bf16.mxu0 0
  %487 = vmatpush1.bf16.msra.mxu0 %v467
  %488 = vmatprep.subr.bf16.mxu0 0
  %489 = vmatpush1.bf16.msra.mxu0 %v468
  %490 = vmatprep.subr.bf16.mxu0 0
  %491 = vmatpush1.bf16.msra.mxu0 %v469
  %492 = vmatprep.subr.bf16.mxu0 0
  %493 = vmatpush1.bf16.msra.mxu0 %v470
  %494 = vmatprep.subr.bf16.mxu0 0
  %495 = vmatpush1.bf16.msra.mxu0 %v471
  %496 = vmatprep.subr.bf16.mxu0 0
  %497 = vmatpush1.bf16.msra.mxu0 0
  %498 = vmatprep.subr.bf16.mxu0 0
  %499 = vmatpush1.bf16.msra.mxu0 0
  %500 = vmatprep.subr.bf16.mxu0 0
  %501 = vmatpush1.bf16.msra.mxu0 0
  %502 = vmatprep.subr.bf16.mxu0 0
  %503 = vmatpush1.bf16.msra.mxu0 0
  %504 = vmatprep.subr.bf16.mxu0 0
  %505 = vmatpush1.bf16.msra.mxu0 0
  %506 = vmatprep.subr.bf16.mxu0 0
  %507 = vmatpush1.bf16.msra.mxu0 0
  %508 = vmatprep.subr.bf16.mxu0 0
  %509 = vmatpush1.bf16.msra.mxu0 0
  %510 = vmatprep.subr.bf16.mxu0 0
  %511 = vmatpush1.bf16.msra.mxu0 0
  %512 = vmatprep.mubr.bf16.mxu0 0
  %513 = vmatmul.mubr.bf16.gmra.mrb[0].mxu0 %v401
  %v514 = vpop.f32.mrb[0].mxu0
  %v515 = vadd.f32 %v430, %v514
  %v516 = vpop.f32.mrb[0].mxu0
  %v517 = vpop.f32.mrb[0].mxu0
  %v518 = vadd.f32 %v430, %v517
  %v519 = vpop.f32.mrb[0].mxu0
  %520 = vmatprep.mubr.bf16.mxu0 0
  %521 = vmatmul.mubr.bf16.gmra.mrb[0].mxu0 %v402
  %v522 = vpop.f32.mrb[0].mxu0
  %v523 = vadd.f32 %v430, %v522
  %v524 = vpop.f32.mrb[0].mxu0
  %v525 = vpop.f32.mrb[0].mxu0
  %v526 = vadd.f32 %v430, %v525
  %v527 = vpop.f32.mrb[0].mxu0
  %528 = vmatprep.mubr.bf16.mxu0 0
  %529 = vmatmul.mubr.bf16.gmra.mrb[0].mxu0 %v403
  %v530 = vpop.f32.mrb[0].mxu0
  %v531 = vadd.f32 %v430, %v530
  %v532 = vpop.f32.mrb[0].mxu0
  %v533 = vpop.f32.mrb[0].mxu0
  %v534 = vadd.f32 %v430, %v533
  %v535 = vpop.f32.mrb[0].mxu0
  %536 = vmatprep.mubr.bf16.mxu0 0
  %537 = vmatmul.mubr.bf16.gmra.mrb[0].mxu0 %v404
  %v538 = vpop.f32.mrb[0].mxu0
  %v539 = vadd.f32 %v430, %v538
  %v540 = vpop.f32.mrb[0].mxu0
  %v541 = vpop.f32.mrb[0].mxu0
  %v542 = vadd.f32 %v430, %v541
  %v543 = vpop.f32.mrb[0].mxu0
  %544 = vmatprep.mubr.bf16.mxu0 0
  %545 = vmatmul.mubr.bf16.gmra.mrb[0].mxu0 %v405
  %v546 = vpop.f32.mrb[0].mxu0
  %v547 = vadd.f32 %v430, %v546
  %v548 = vpop.f32.mrb[0].mxu0
  %v549 = vpop.f32.mrb[0].mxu0
  %v550 = vadd.f32 %v430, %v549
  %v551 = vpop.f32.mrb[0].mxu0
  %552 = vmatprep.mubr.bf16.mxu0 0
  %553 = vmatmul.mubr.bf16.gmra.mrb[0].mxu0 %v406
  %v554 = vpop.f32.mrb[0].mxu0
  %v555 = vadd.f32 %v430, %v554
  %v556 = vpop.f32.mrb[0].mxu0
  %v557 = vpop.f32.mrb[0].mxu0
  %v558 = vadd.f32 %v430, %v557
  %v559 = vpop.f32.mrb[0].mxu0
  %560 = vmatprep.mubr.bf16.mxu0 0
  %561 = vmatmul.mubr.bf16.gmra.mrb[0].mxu0 %v407
  %v562 = vpop.f32.mrb[0].mxu0
  %v563 = vadd.f32 %v430, %v562
  %v564 = vpop.f32.mrb[0].mxu0
  %v565 = vpop.f32.mrb[0].mxu0
  %v566 = vadd.f32 %v430, %v565
  %v567 = vpop.f32.mrb[0].mxu0
  %568 = vmatprep.mubr.bf16.mxu0 0
  %569 = vmatmul.mubr.bf16.gmra.mrb[0].mxu0 %v408
  %v570 = vpop.f32.mrb[0].mxu0
  %v571 = vadd.f32 %v430, %v570
  %v572 = vpop.f32.mrb[0].mxu0
  %v573 = vpop.f32.mrb[0].mxu0
  %v574 = vadd.f32 %v430, %v573
  %v575 = vpop.f32.mrb[0].mxu0
  %576 = vdwg.mxu0
  %v577 = vmax.f32 %v515, 0.0
  %v578 = vmax.f32 %v518, 0.0
  %v579 = vmax.f32 %v523, 0.0
  %v580 = vmax.f32 %v526, 0.0
  %v581 = vmax.f32 %v531, 0.0
  %v582 = vmax.f32 %v534, 0.0
  %v583 = vmax.f32 %v539, 0.0
  %v584 = vmax.f32 %v542, 0.0
  %v585 = vmax.f32 %v547, 0.0
  %v586 = vmax.f32 %v550, 0.0
  %v587 = vmax.f32 %v555, 0.0
  %v588 = vmax.f32 %v558, 0.0
  %v589 = vmax.f32 %v563, 0.0
  %v590 = vmax.f32 %v566, 0.0
  %v591 = vmax.f32 %v571, 0.0
  %v592 = vmax.f32 %v574, 0.0
  %v593 = vld [vmem:[%s7] sm:$0x1]
  %v594 = vpack.c.bf16 %v578, %v577
  %v595 = vpack.c.bf16 %v580, %v579
  %v596 = vpack.c.bf16 %v582, %v581
  %v597 = vpack.c.bf16 %v584, %v583
  %v598 = vpack.c.bf16 %v586, %v585
  %v599 = vpack.c.bf16 %v588, %v587
  %v600 = vpack.c.bf16 %v590, %v589
  %v601 = vpack.c.bf16 %v592, %v591
  %v602 = vld [vmem:[#allocation2] sm:$0x1]
  %604 = vset.pattern.permute.xlu0 0
  %605 = vperm.xlu0 %604, %v602
  %v606 = vpop.permute.xlu0 %605
  %v608 = vlaneseq
  %v609 = vshrl.u32 %v608, 7
  %v610 = vsub.s32 0, %v609
  %v611 = vrot.slane %v606, %v610
  %612 = vmatprep.subr.bf16.mxu0 0
  %613 = vmatpush1.bf16.xpose.msra.mxu0 %v594
  %614 = vmatprep.subr.bf16.mxu0 0
  %615 = vmatpush1.bf16.xpose.msra.mxu0 %v595
  %616 = vmatprep.subr.bf16.mxu0 0
  %617 = vmatpush1.bf16.xpose.msra.mxu0 %v596
  %618 = vmatprep.subr.bf16.mxu0 0
  %619 = vmatpush1.bf16.xpose.msra.mxu0 %v597
  %620 = vmatprep.subr.bf16.mxu0 0
  %621 = vmatpush1.bf16.xpose.msra.mxu0 %v598
  %622 = vmatprep.subr.bf16.mxu0 0
  %623 = vmatpush1.bf16.xpose.msra.mxu0 %v599
  %624 = vmatprep.subr.bf16.mxu0 0
  %625 = vmatpush1.bf16.xpose.msra.mxu0 %v600
  %626 = vmatprep.subr.bf16.mxu0 0
  %627 = vmatpush1.bf16.xpose.msra.mxu0 %v601
  %628 = vmatprep.subr.bf16.mxu0 0
  %629 = vmatpush1.bf16.xpose.msra.mxu0 0
  %630 = vmatprep.subr.bf16.mxu0 0
  %631 = vmatpush1.bf16.xpose.msra.mxu0 0
  %632 = vmatprep.subr.bf16.mxu0 0
  %633 = vmatpush1.bf16.xpose.msra.mxu0 0
  %634 = vmatprep.subr.bf16.mxu0 0
  %635 = vmatpush1.bf16.xpose.msra.mxu0 0
  %636 = vmatprep.subr.bf16.mxu0 0
  %637 = vmatpush1.bf16.xpose.msra.mxu0 0
  %638 = vmatprep.subr.bf16.mxu0 0
  %639 = vmatpush1.bf16.xpose.msra.mxu0 0
  %640 = vmatprep.subr.bf16.mxu0 0
  %641 = vmatpush1.bf16.xpose.msra.mxu0 0
  %642 = vmatprep.subr.bf16.mxu0 0
  %643 = vmatpush1.bf16.xpose.msra.mxu0 0
  %644 = vmatprep.mubr.bf16.mxu0 0
  %645 = vmatmul.mubr.bf16.gmra.mrb[0].mxu0 %v593
  %v646 = vpop.f32.mrb[0].mxu0
  %v647 = vadd.f32 %v611, %v646
  %v648 = vpop.f32.mrb[0].mxu0
  %v649 = vpop.f32.mrb[0].mxu0
  %v650 = vpop.f32.mrb[0].mxu0
  %651 = vdwg.mxu0
  %652 = vst [vmem:[%s9] sm:$0x1] %v647
  // Predicated region
  $region38: #{mlp_forward.1} parent=0 // pred_check
    _
  $region39: #{mlp_forward.1} parent=0 // pred_check_branch
    %654 = sbr.rel (0) target = $region41
  $region40: #{mlp_forward.1} parent=0 // pred_region
    _
  $region41: #{mlp_forward.1} parent=0 // pred_fallthru
    _
  // Predicated region
  $region42: #{mlp_forward.1} parent=0 // pred_check
    _
  $region43: #{mlp_forward.1} parent=0 // pred_check_branch
    %656 = sbr.rel (0) target = $region45
  $region44: #{mlp_forward.1} parent=0 // pred_region
    _
  $region45: #{mlp_forward.1} parent=0 // pred_fallthru
    _

</llo_original>
